<compile_context>
chip_gen: v6e
topology: v6e:2x2x1
jax: 0.10.0
libtpu: 0.0.40
codegen_flags: <defaults>
</compile_context>

<pallas_src>
import functools

import jax
import jax.numpy as jnp
import numpy as np
from jax.experimental import pallas as pl
from jax.experimental.pallas import tpu as pltpu


# --------------------------------------------------------------------------
# Kernel: accumulate sum over pixels of ||pred - tgt||_2 (norm over channels)
# --------------------------------------------------------------------------
def _l2_kernel(pred_ref, tgt_ref, loss_ref, acc_ref, *, inv_count):
    # pred_ref / tgt_ref: (1, C, TILE_H, W) blocks of the NCHW inputs.
    step = pl.program_id(0) * pl.num_programs(1) + pl.program_id(1)
    last = pl.num_programs(0) * pl.num_programs(1) - 1

    @pl.when(step == 0)
    def _():
        acc_ref[0] = jnp.float32(0.0)

    d = pred_ref[...].astype(jnp.float32) - tgt_ref[...].astype(jnp.float32)
    # per-pixel squared L2 norm over the channel axis -> (1, TILE_H, W),
    # lane-dense in W; sqrt runs lane-dense on the EUP.
    sq = jnp.sum(d * d, axis=1)
    acc_ref[0] += jnp.sum(jnp.sqrt(sq))

    @pl.when(step == last)
    def _():
        loss_ref[0] = acc_ref[0] * jnp.float32(inv_count)


def _pick_tile_h(H, C, W, itemsize, budget_bytes):
    # Largest divisor of H that is a multiple of 8 and keeps one input block
    # within budget; fall back to the smallest aligned divisor, else full H.
    divisors = [th for th in range(8, H + 1, 8) if H % th == 0]
    if not divisors:
        return H
    fitting = [th for th in divisors if C * th * W * itemsize <= budget_bytes]
    return max(fitting) if fitting else min(divisors)


def l2_loss(output, target, *, block_budget_bytes=2 << 20):
    assert output.shape == target.shape, (output.shape, target.shape)
    # Normalize to NCHW with the widest axis last (lane axis).
    if output.ndim == 2:                       # (N, C) -> (N, C, 1, 1)
        output = output[:, :, None, None]
        target = target[:, :, None, None]
    elif output.ndim == 3:                     # (N, C, L) -> (N, C, 1, L)
        output = output[:, :, None, :]
        target = target[:, :, None, :]
    assert output.ndim == 4, "expected NCHW-like inputs"

    N, C, H, W = output.shape
    itemsize = max(jnp.dtype(output.dtype).itemsize,
                   jnp.dtype(target.dtype).itemsize)
    tile_h = _pick_tile_h(H, C, W, itemsize, block_budget_bytes)
    grid = (N, H // tile_h)
    inv_count = 1.0 / float(N * H * W)

    block = (1, C, tile_h, W)
    idx = lambda n, h: (n, 0, h, 0)

    cost = pl.CostEstimate(
        flops=3 * N * C * H * W,
        transcendentals=N * H * W,
        bytes_accessed=(output.size * jnp.dtype(output.dtype).itemsize
                        + target.size * jnp.dtype(target.dtype).itemsize + 4),
    )

    loss = pl.pallas_call(
        functools.partial(_l2_kernel, inv_count=inv_count),
        out_shape=jax.ShapeDtypeStruct((1,), jnp.float32),
        grid_spec=pltpu.PrefetchScalarGridSpec(
            num_scalar_prefetch=0,
            grid=grid,
            in_specs=[pl.BlockSpec(block, idx),
                      pl.BlockSpec(block, idx)],
            out_specs=pl.BlockSpec((1,), lambda n, h: (0,),
                                   memory_space=pltpu.MemorySpace.SMEM),
            scratch_shapes=[pltpu.SMEM((1,), jnp.float32)],
        ),
        compiler_params=pltpu.CompilerParams(
            dimension_semantics=("arbitrary", "arbitrary"),
            vmem_limit_bytes=32 << 20,
        ),
        cost_estimate=cost,
    )(output, target)
    return loss[0]


# --------------------------------------------------------------------------
# Module wrapper: forward semantics of losses.L2
# --------------------------------------------------------------------------
class L2:
    def __init__(self):
        pass

    def __call__(self, output, target):
        return l2_loss(output, target)


# --------------------------------------------------------------------------
# Self-test
# --------------------------------------------------------------------------
def _ref_l2(output, target):
    d = output.astype(jnp.float32) - target.astype(jnp.float32)
    return jnp.mean(jnp.sqrt(jnp.sum(d * d, axis=1)))


if __name__ == "__main__":
    key = jax.random.PRNGKey(0)
    N, C, H, W = 2, 2, 16, 16
    k1, k2 = jax.random.split(key)
    output = jax.random.normal(k1, (N, C, H, W), jnp.float32)
    target = jax.random.normal(k2, (N, C, H, W), jnp.float32)

    mod = L2()

    # f32, default tiling (grid = (N, 1))
    loss = jax.block_until_ready(mod(output, target))
    ref = _ref_l2(output, target)
    assert np.allclose(np.array(loss), np.array(ref),
                       rtol=1e-5, atol=1e-6), (loss, ref)

    # Force multiple H tiles to exercise the cross-grid-step accumulator.
    loss_tiled = jax.block_until_ready(
        l2_loss(output, target, block_budget_bytes=C * 8 * W * 4))
    assert np.allclose(np.array(loss_tiled), np.array(ref),
                       rtol=1e-5, atol=1e-6), (loss_tiled, ref)

    # bf16 inputs: read narrow from HBM, upcast inside the kernel.
    out_bf = output.astype(jnp.bfloat16)
    tgt_bf = target.astype(jnp.bfloat16)
    loss_bf = jax.block_until_ready(mod(out_bf, tgt_bf))
    ref_bf = _ref_l2(out_bf, tgt_bf)
    assert np.allclose(np.array(loss_bf), np.array(ref_bf),
                       rtol=1e-4, atol=1e-5), (loss_bf, ref_bf)

    print("KERNEL_OK")
</pallas_src>

<mosaic_0001>
module attributes {stable_mosaic.version = 11 : i64} {
  func.func @_l2_kernel(%arg0: i32, %arg1: i32, %arg2: memref<1x2x16x16xf32, #tpu.memory_space<vmem>>, %arg3: memref<1x2x16x16xf32, #tpu.memory_space<vmem>>, %arg4: memref<1xf32, #tpu.memory_space<smem>>, %arg5: memref<1xf32, #tpu.memory_space<smem>>) attributes {dimension_semantics = [#tpu.dimension_semantics<arbitrary>, #tpu.dimension_semantics<arbitrary>], iteration_bounds = array<i64: 2, 1>, scalar_prefetch = 0 : i64, scratch_operands = 1 : i64, tpu.core_type = #tpu.core_type<tc>, window_params = [{transform_indices = @transform_0, window_bounds = array<i64: 1, 2, 16, 16>}, {transform_indices = @transform_1, window_bounds = array<i64: 1, 2, 16, 16>}, {transform_indices = @transform_2, window_bounds = array<i64: 1>}]} {
    %c1_i32 = arith.constant 1 : i32
    %0 = arith.muli %arg0, %c1_i32 : i32
    %1 = arith.addi %0, %arg1 : i32
    %c0_i32 = arith.constant 0 : i32
    %2 = arith.cmpi eq, %1, %c0_i32 : i32
    %3 = arith.extui %2 : i1 to i32
    %c0_i32_0 = arith.constant 0 : i32
    %4 = arith.cmpi ne, %3, %c0_i32_0 : i32
    scf.if %4 {
      %cst_13 = arith.constant 0.000000e+00 : f32
      %c0_14 = arith.constant 0 : index
      %21 = memref.load %arg5[%c0_14] : memref<1xf32, #tpu.memory_space<smem>>
      memref.store %cst_13, %arg5[%c0_14] : memref<1xf32, #tpu.memory_space<smem>>
    } else {
    }
    %c0 = arith.constant 0 : index
    %c0_1 = arith.constant 0 : index
    %c0_2 = arith.constant 0 : index
    %c0_3 = arith.constant 0 : index
    %5 = vector.load %arg2[%c0, %c0_1, %c0_2, %c0_3] : memref<1x2x16x16xf32, #tpu.memory_space<vmem>>, vector<1x2x16x16xf32>
    %c0_4 = arith.constant 0 : index
    %c0_5 = arith.constant 0 : index
    %c0_6 = arith.constant 0 : index
    %c0_7 = arith.constant 0 : index
    %6 = vector.load %arg3[%c0_4, %c0_5, %c0_6, %c0_7] : memref<1x2x16x16xf32, #tpu.memory_space<vmem>>, vector<1x2x16x16xf32>
    %7 = arith.subf %5, %6 : vector<1x2x16x16xf32>
    %8 = arith.mulf %7, %7 : vector<1x2x16x16xf32>
    %cst = arith.constant dense<0.000000e+00> : vector<1x16x16xf32>
    %9 = vector.multi_reduction <add>, %8, %cst [1] : vector<1x2x16x16xf32> to vector<1x16x16xf32>
    %c0_8 = arith.constant 0 : index
    %10 = memref.load %arg5[%c0_8] : memref<1xf32, #tpu.memory_space<smem>>
    %11 = math.sqrt %9 : vector<1x16x16xf32>
    %12 = vector.shape_cast %11 : vector<1x16x16xf32> to vector<1x1x16x16xf32>
    %cst_9 = arith.constant dense<0.000000e+00> : vector<1xf32>
    %13 = vector.multi_reduction <add>, %12, %cst_9 [1, 2, 3] : vector<1x1x16x16xf32> to vector<1xf32>
    %14 = vector.shape_cast %13 : vector<1xf32> to vector<1x1x1x1xf32>
    %15 = vector.extract %14[0, 0, 0, 0] : f32 from vector<1x1x1x1xf32>
    %16 = arith.addf %10, %15 : f32
    %c0_10 = arith.constant 0 : index
    %17 = memref.load %arg5[%c0_10] : memref<1xf32, #tpu.memory_space<smem>>
    memref.store %16, %arg5[%c0_10] : memref<1xf32, #tpu.memory_space<smem>>
    %c1_i32_11 = arith.constant 1 : i32
    %18 = arith.cmpi eq, %1, %c1_i32_11 : i32
    %19 = arith.extui %18 : i1 to i32
    %c0_i32_12 = arith.constant 0 : i32
    %20 = arith.cmpi ne, %19, %c0_i32_12 : i32
    scf.if %20 {
      %c0_13 = arith.constant 0 : index
      %21 = memref.load %arg5[%c0_13] : memref<1xf32, #tpu.memory_space<smem>>
      %cst_14 = arith.constant 0.001953125 : f32
      %22 = arith.mulf %21, %cst_14 : f32
      %c0_15 = arith.constant 0 : index
      %23 = memref.load %arg4[%c0_15] : memref<1xf32, #tpu.memory_space<smem>>
      memref.store %22, %arg4[%c0_15] : memref<1xf32, #tpu.memory_space<smem>>
    } else {
    }
    return
  }
  func.func @transform_0(%arg0: i32, %arg1: i32) -> (i32, i32, i32, i32) {
    %c0_i32 = arith.constant 0 : i32
    %c0_i32_0 = arith.constant 0 : i32
    %c0_i32_1 = arith.constant 0 : i32
    return %arg0, %c0_i32, %arg1, %c0_i32_0 : i32, i32, i32, i32
  }
  func.func @transform_1(%arg0: i32, %arg1: i32) -> (i32, i32, i32, i32) {
    %c0_i32 = arith.constant 0 : i32
    %c0_i32_0 = arith.constant 0 : i32
    %c0_i32_1 = arith.constant 0 : i32
    return %arg0, %c0_i32, %arg1, %c0_i32_0 : i32, i32, i32, i32
  }
  func.func @transform_2(%arg0: i32, %arg1: i32) -> i32 {
    %c0_i32 = arith.constant 0 : i32
    %c0_i32_0 = arith.constant 0 : i32
    return %c0_i32 : i32
  }
}

</mosaic_0001>

<llo_original>
// kernel: tpu_custom_call.1
$region0: #{tpu_custom_call.1}
  #allocation0 [shape = 'u32[]', space=smem, size = 0x4, offset = 0x4, fixed_abs, tag = 'smem constant byte address 0x4 - core index']
  #allocation1 [shape = 'u32[144,128]{1,0:T(1,128)}', space=vmem, size = 0x12000, scoped, tag = 'internal scratch']
  #allocation2 [shape = 'f32[1]{0:T(128)}', space=smem, size = 0x200, scoped, tag = 'scratch operand']
  %s0 = inlined_call_operand.hbm [shape: f32[2,2,16,16], index: 0, kind: input, shape index: {}]
  %s1 = inlined_call_operand.hbm [shape: f32[2,2,16,16], index: 1, kind: input, shape index: {}]
  %s2 = inlined_call_operand.hbm [shape: f32[1], index: 2, kind: output, shape index: {}]
  %s3 = sld [smem:[#allocation0]]
  $region57: #{tpu_custom_call.1} parent=0
    _
  %s5 = ssub.s32 1, %s3
  %s6 = scalar_select 0, %s5, %s3
  $region1: #{tpu_custom_call.1} parent=0
    #allocation3 [shape = 'u8[32768]{0}', space=vmem, size = 0x8000, scoped, tag = 'input window, operand 0']
    #allocation4 [shape = 's32[2]{0}', space=sflag, size = 0x8, scoped, tag = 'scoped memory for tpu_custom_call.1']
    #allocation5 [shape = 's32[2]{0}', space=sflag, size = 0x8, scoped, tag = 'scoped memory for tpu_custom_call.1']
    #allocation6 [shape = 'u8[32768]{0}', space=vmem, size = 0x8000, scoped, tag = 'input window, operand 1']
    #allocation7 [shape = 's32[2]{0}', space=sflag, size = 0x8, scoped, tag = 'scoped memory for tpu_custom_call.1']
    #allocation8 [shape = 'u8[512]{0}', space=smem, size = 0x200, scoped, tag = 'output window, operand 0, single buffered']
    %7 = vsyncpa [#allocation4], 0
    %s8 = scalar_lea.sflag [#allocation4], 1
    %9 = vsyncpa %s8, 0
    %10 = vsyncpa [#allocation7], 0
    %s11 = scalar_lea.sflag [#allocation7], 1
    %12 = vsyncpa %s11, 0
    %13 = vsyncpa [#allocation5], 0
    loop: start=0, step=1, limit=4
    $region2: #{tpu_custom_call.1} parent=1 // loop_pre_header
      _
    $region3: #{tpu_custom_call.1} parent=1 // loop_header
      %s15 = sphi 0, %s19
      %p16 = scmp.ge.s32.totalorder %s15, 4
      %s22 = sphi 0, %s34
      %s23 = sphi 0, %s30
      %s24 = sphi 0, %s22
      %s25 = sphi 0, %s23
      %s26 = sphi 0, %s24
      %s27 = sphi 0, %s25
      %s39 = sphi 0, %s41
      %s42 = sphi 0, %s39
      %s43 = sphi 0, %s42
      %s59 = sphi 0, %s43
      %s67 = sphi 0, %s69
      %s70 = sphi 0, %s67
      %s71 = sphi 0, %s70
      %s87 = sphi 0, %s71
      %s91 = sphi 0, %s91
      %s93 = sphi 0, %s91
      %s94 = sphi 0, %s93
      %s108 = sphi 0, %s94
    $region4: #{tpu_custom_call.1} parent=1 // loop_header_branch
      %18 = sbr.rel (%p16) target = $region8
    $region5: #{tpu_custom_call.1} parent=1 // loop_body
      %s20 = ssub.s32 %s15, 1
      %s21 = ssub.s32 %s15, 2
      %s28 = sadd.s32 1, %s23
      %p29 = scmp.ge.s32.totalorder %s28, 1
      %s30 = scalar_select %p29, 0, %s28
      %s31 = sadd.s32 1, %s22
      %s32 = scalar_select %p29, %s31, %s22
      %p33 = scmp.ge.s32.totalorder %s32, 2
      %s34 = scalar_select %p33, 0, %s32
      %s35 = ssub.s32 %s22, %s34
      %s36 = ssub.s32 %s23, %s30
      %s37 = sor.u32 %s35, %s36
      %p38 = scmp.eq.s32.totalorder %s37, 0
      %s40 = sadd.s32 %s39, 1
      %s41 = scalar_select %p38, %s39, %s40
      %p44 = pneg %p38
      %p45 = scmp.eq.s32.totalorder %s15, 1
      %p46 = por %p44, %p45
      %p47 = scmp.ne.s32.totalorder %s39, %s42
      %p48 = scmp.eq.s32.totalorder %s15, 0
      %p49 = por %p47, %p48
      %p50 = scmp.ne.s32.totalorder %s39, %s42
      %p51 = scmp.eq.s32.totalorder %s20, 1
      %p52 = por %p50, %p51
      %p53 = scmp.ne.s32.totalorder %s42, %s43
      %p54 = scmp.eq.s32.totalorder %s20, 0
      %p55 = por %p53, %p54
      %p56 = scmp.ne.s32.totalorder %s42, %s43
      %p57 = scmp.eq.s32.totalorder %s21, 1
      %p58 = por %p56, %p57
      %p60 = scmp.ne.s32.totalorder %s43, %s59
      %p61 = scmp.eq.s32.totalorder %s21, 0
      %p62 = por %p60, %p61
      %s63 = ssub.s32 %s22, %s34
      %s64 = ssub.s32 %s23, %s30
      %s65 = sor.u32 %s63, %s64
      %p66 = scmp.eq.s32.totalorder %s65, 0
      %s68 = sadd.s32 %s67, 1
      %s69 = scalar_select %p66, %s67, %s68
      %p72 = pneg %p66
      %p73 = scmp.eq.s32.totalorder %s15, 1
      %p74 = por %p72, %p73
      %p75 = scmp.ne.s32.totalorder %s67, %s70
      %p76 = scmp.eq.s32.totalorder %s15, 0
      %p77 = por %p75, %p76
      %p78 = scmp.ne.s32.totalorder %s67, %s70
      %p79 = scmp.eq.s32.totalorder %s20, 1
      %p80 = por %p78, %p79
      %p81 = scmp.ne.s32.totalorder %s70, %s71
      %p82 = scmp.eq.s32.totalorder %s20, 0
      %p83 = por %p81, %p82
      %p84 = scmp.ne.s32.totalorder %s70, %s71
      %p85 = scmp.eq.s32.totalorder %s21, 1
      %p86 = por %p84, %p85
      %p88 = scmp.ne.s32.totalorder %s71, %s87
      %p89 = scmp.eq.s32.totalorder %s21, 0
      %p90 = por %p88, %p89
      %s92 = sadd.s32 %s91, 1
      %p95 = scmp.eq.s32.totalorder %s15, 1
      %p96 = scmp.ne.s32.totalorder %s91, %s93
      %p97 = scmp.eq.s32.totalorder %s15, 0
      %p98 = por %p96, %p97
      %p99 = scmp.ne.s32.totalorder %s91, %s93
      %p100 = scmp.eq.s32.totalorder %s20, 1
      %p101 = por %p99, %p100
      %p102 = scmp.ne.s32.totalorder %s93, %s94
      %p103 = scmp.eq.s32.totalorder %s20, 0
      %p104 = por %p102, %p103
      %p105 = scmp.ne.s32.totalorder %s93, %s94
      %p106 = scmp.eq.s32.totalorder %s21, 1
      %p107 = por %p105, %p106
      %p109 = scmp.ne.s32.totalorder %s94, %s108
      %p110 = scmp.eq.s32.totalorder %s21, 0
      %p111 = por %p109, %p110
      %p112 = scmp.le.s32.totalorder 1, %s15
      %p113 = scmp.lt.s32.totalorder %s15, 3
      %p114 = pnand %p112, %p113
      %p115 = pneg %p114
      // Predicated region
      $region9: #{tpu_custom_call.1} parent=5 // pred_check
        _
      $region10: #{tpu_custom_call.1} parent=5 // pred_check_branch
        %117 = sbr.rel (%p114) target = $region12
      $region11: #{tpu_custom_call.1} parent=5 // pred_region
        %s118 = ssub.s32 %s15, 1
      $region12: #{tpu_custom_call.1} parent=5 // pred_fallthru
        _
      %p119 = scmp.lt.s32.totalorder %s15, 2
      // Predicated region
      $region13: #{tpu_custom_call.1} parent=5 // pred_check
        %p120 = pneg %p119
      $region14: #{tpu_custom_call.1} parent=5 // pred_check_branch
        %122 = sbr.rel (%p120) target = $region16
      $region15: #{tpu_custom_call.1} parent=5 // pred_region
        // Predicated region
        $region17: #{tpu_custom_call.1} parent=15 // pred_check
          %p123 = pneg %p49
        $region18: #{tpu_custom_call.1} parent=15 // pred_check_branch
          %125 = sbr.rel (%p123) target = $region20
        $region19: #{tpu_custom_call.1} parent=15 // pred_region
          %s126 = sand.u32 %s39, 1
          %s127 = scalar_lea.sflag [#allocation4], %s126
          %s128 = sand.u32 %s39, 1
          %s129 = smul.addr %s128, 32
          %s130 = scalar_lea.vmem [#allocation3], %s129
          %s131 = smul.u32 2, %s23
          %s133 = ssub.s32 512, 512
          %134 = vsyncadd %s127, %s133
          %s135 = smul.addr %s22, 4
          %s136 = sadd.s32 %s131, %s135
          %s137 = smul.addr %s136, 128
          %s138 = scalar_lea.hbm %s0, %s137
          %s139 = sshll.u32 %s130, 4
          %s140 = int_to_ptr.vmem [resolvable:$true] %s139
          %145 = dma.hbm_to_vmem [thread:$0]  %s138, 512, %s140, %s127, 128, 128, 8
        $region20: #{tpu_custom_call.1} parent=15 // pred_fallthru
          _
        // Predicated region
        $region21: #{tpu_custom_call.1} parent=15 // pred_check
          %p146 = pneg %p77
        $region22: #{tpu_custom_call.1} parent=15 // pred_check_branch
          %148 = sbr.rel (%p146) target = $region24
        $region23: #{tpu_custom_call.1} parent=15 // pred_region
          %s149 = sand.u32 %s67, 1
          %s150 = scalar_lea.sflag [#allocation7], %s149
          %s151 = sand.u32 %s67, 1
          %s152 = smul.addr %s151, 32
          %s153 = scalar_lea.vmem [#allocation6], %s152
          %s154 = smul.u32 2, %s23
          %s156 = ssub.s32 512, 512
          %157 = vsyncadd %s150, %s156
          %s158 = smul.addr %s22, 4
          %s159 = sadd.s32 %s154, %s158
          %s160 = smul.addr %s159, 128
          %s161 = scalar_lea.hbm %s1, %s160
          %s162 = sshll.u32 %s153, 4
          %s163 = int_to_ptr.vmem [resolvable:$true] %s162
          %168 = dma.hbm_to_vmem [thread:$0]  %s161, 512, %s163, %s150, 128, 128, 8
        $region24: #{tpu_custom_call.1} parent=15 // pred_fallthru
          _
      $region16: #{tpu_custom_call.1} parent=5 // pred_fallthru
        _
      %p169 = scmp.le.s32.totalorder 1, %s15
      %p170 = scmp.lt.s32.totalorder %s15, 3
      %p171 = pnand %p169, %p170
      %p172 = pneg %p171
      // Predicated region
      $region25: #{tpu_custom_call.1} parent=5 // pred_check
        _
      $region26: #{tpu_custom_call.1} parent=5 // pred_check_branch
        %174 = sbr.rel (%p171) target = $region28
      $region27: #{tpu_custom_call.1} parent=5 // pred_region
        %s175 = ssub.s32 %s15, 1
        %s176 = sand.u32 %s42, 1
        %s177 = scalar_lea.sflag [#allocation4], %s176
        %s178 = sand.u32 %s42, 1
        %s179 = smul.addr %s178, 32
        %s180 = scalar_lea.vmem [#allocation3], %s179
        // Predicated region
        $region29: #{tpu_custom_call.1} parent=27 // pred_check
          %p181 = pneg %p55
        $region30: #{tpu_custom_call.1} parent=27 // pred_check_branch
          %183 = sbr.rel (%p181) target = $region32
        $region31: #{tpu_custom_call.1} parent=27 // pred_region
          %184 = dma.done %s177, 512
        $region32: #{tpu_custom_call.1} parent=27 // pred_fallthru
          _
        %s185 = sand.u32 %s70, 1
        %s186 = scalar_lea.sflag [#allocation7], %s185
        %s187 = sand.u32 %s70, 1
        %s188 = smul.addr %s187, 32
        %s189 = scalar_lea.vmem [#allocation6], %s188
        // Predicated region
        $region33: #{tpu_custom_call.1} parent=27 // pred_check
          %p190 = pneg %p83
        $region34: #{tpu_custom_call.1} parent=27 // pred_check_branch
          %192 = sbr.rel (%p190) target = $region36
        $region35: #{tpu_custom_call.1} parent=27 // pred_region
          %193 = dma.done %s186, 512
        $region36: #{tpu_custom_call.1} parent=27 // pred_fallthru
          _
        %s194 = sand.u32 %s42, 1
        %s195 = scalar_lea.sflag [#allocation4], %s194
        %s196 = sand.u32 %s42, 1
        %s197 = smul.addr %s196, 32
        %s198 = scalar_lea.vmem [#allocation3], %s197
        %p199 = pneg %p55
        %p200 = pneg %p52
        %s201 = sand.u32 %s70, 1
        %s202 = scalar_lea.sflag [#allocation7], %s201
        %s203 = sand.u32 %s70, 1
        %s204 = smul.addr %s203, 32
        %s205 = scalar_lea.vmem [#allocation6], %s204
        %p206 = pneg %p83
        %p207 = pneg %p80
        %p208 = pneg %p104
        %p209 = pneg %p101
        %s210 = smul.u32 2, %s25
        %s211 = smul.u32 2, %s25
        %s212 = sadd.s32 %s24, %s25
        %p213 = scmp.eq.s32.totalorder %s212, 0
        // Predicated region
        $region37: #{tpu_custom_call.1} parent=27 // pred_check
          %p214 = pneg %p213
        $region38: #{tpu_custom_call.1} parent=27 // pred_check_branch
          %216 = sbr.rel (%p214) target = $region40
        $region39: #{tpu_custom_call.1} parent=27 // pred_region
          %s217 = scalar_lea.smem [#allocation2], 0
          %218 = sst [smem:[%s217]] 0.0
        $region40: #{tpu_custom_call.1} parent=27 // pred_fallthru
          _
        %v219 = vld [vmem:[%s180] sm:$0xff]
        %v220 = vld [vmem:[%s180 + $0x8] sm:$0xff]
        %v221 = vld [vmem:[%s180 + $0x10] sm:$0xff]
        %v222 = vld [vmem:[%s180 + $0x18] sm:$0xff]
        %v223 = vld [vmem:[%s189] sm:$0xff]
        %v224 = vld [vmem:[%s189 + $0x8] sm:$0xff]
        %v225 = vld [vmem:[%s189 + $0x10] sm:$0xff]
        %v226 = vld [vmem:[%s189 + $0x18] sm:$0xff]
        %v227 = vsub.f32 %v219, %v223
        %v228 = vsub.f32 %v220, %v224
        %v229 = vsub.f32 %v221, %v225
        %v230 = vsub.f32 %v222, %v226
        %v231 = vmul.f32 %v227, %v227
        %v232 = vmul.f32 %v228, %v228
        %v233 = vmul.f32 %v229, %v229
        %v234 = vmul.f32 %v230, %v230
        %vm235 = vcmask 130048
        %v236 = vsel %vm235, %v231, 0.0
        %v237 = vsel %vm235, %v233, 0.0
        %v238 = vadd.f32 %v236, %v237
        %v239 = vsel %vm235, %v232, 0.0
        %v240 = vsel %vm235, %v234, 0.0
        %v241 = vadd.f32 %v239, %v240
        %s242 = sld [smem:[#allocation2]]
        %v243 = vrsqrt.pop %v238
        %v244 = vmul.f32 %v238, %v243
        %vm245 = vcmp.eq.f32.partialorder %v238, inf
        %v246 = vsel %vm245, %v238, %v244
        %vm247 = vcmp.eq.f32.partialorder %v238, 0.0
        %v248 = vand.u32 %v238, 2147483648
        %v249 = vsel %vm247, %v248, %v246
        %v250 = vrsqrt.pop %v241
        %v251 = vmul.f32 %v241, %v250
        %vm252 = vcmp.eq.f32.partialorder %v241, inf
        %v253 = vsel %vm252, %v241, %v251
        %vm254 = vcmp.eq.f32.partialorder %v241, 0.0
        %v255 = vand.u32 %v241, 2147483648
        %v256 = vsel %vm254, %v255, %v253
        %v257 = vsel %vm235, %v249, 0.0
        %v258 = vsel %vm235, %v256, 0.0
        %v259 = vadd.f32 %v257, %v258
        %260 = vadd.xlane.f32.xlu0 %v259
        %v261 = vpop.xlane.xlu0 %260
        %v262 = vrot.slane %v261, 4
        %v263 = vadd.f32 %v261, %v262
        %v264 = vrot.slane %v263, 2
        %v265 = vadd.f32 %v263, %v264
        %v266 = vrot.slane %v265, 1
        %v267 = vadd.f32 %v265, %v266
        %s268 = vtos %v267
        %s269 = sadd.f32 %s242, %s268
        %s270 = scalar_lea.smem [#allocation2], 0
        %271 = sst [smem:[%s270]] %s269
        %p272 = scmp.eq.s32.totalorder %s212, 1
        // Predicated region
        $region41: #{tpu_custom_call.1} parent=27 // pred_check
          %p273 = pneg %p272
        $region42: #{tpu_custom_call.1} parent=27 // pred_check_branch
          %275 = sbr.rel (%p273) target = $region44
        $region43: #{tpu_custom_call.1} parent=27 // pred_region
          %s276 = sld [smem:[#allocation2]]
          %s277 = smul.f32 %s276, 0.001953125
          %s278 = scalar_lea.smem [#allocation8], 0
          %279 = sst [smem:[%s278]] %s277
        $region44: #{tpu_custom_call.1} parent=27 // pred_fallthru
          _
        // Predicated region
        $region45: #{tpu_custom_call.1} parent=27 // pred_check
          %p280 = pneg %p101
        $region46: #{tpu_custom_call.1} parent=27 // pred_check_branch
          %282 = sbr.rel (%p280) target = $region48
        $region47: #{tpu_custom_call.1} parent=27 // pred_region
          %s284 = ssub.s32 16, 16
          %285 = vsyncadd [#allocation5], %s284
          %288 = dma.smem_to_hbm [#allocation8], 16, %s2, [#allocation5]
        $region48: #{tpu_custom_call.1} parent=27 // pred_fallthru
          _
        // Predicated region
        $region49: #{tpu_custom_call.1} parent=27 // pred_check
          %p289 = pneg %p101
        $region50: #{tpu_custom_call.1} parent=27 // pred_check_branch
          %291 = sbr.rel (%p289) target = $region52
        $region51: #{tpu_custom_call.1} parent=27 // pred_region
          %292 = dma.done [#allocation5], 16
        $region52: #{tpu_custom_call.1} parent=27 // pred_fallthru
          _
        %293 = sfence
      $region28: #{tpu_custom_call.1} parent=5 // pred_fallthru
        _
      %p294 = scmp.le.s32.totalorder 2, %s15
      // Predicated region
      $region53: #{tpu_custom_call.1} parent=5 // pred_check
        %p295 = pneg %p294
      $region54: #{tpu_custom_call.1} parent=5 // pred_check_branch
        %297 = sbr.rel (%p295) target = $region56
      $region55: #{tpu_custom_call.1} parent=5 // pred_region
        %s298 = ssub.s32 %s15, 2
      $region56: #{tpu_custom_call.1} parent=5 // pred_fallthru
        _
    $region6: #{tpu_custom_call.1} parent=1 // loop_footer
      %s19 = sadd.s32 1, %s15
    $region7: #{tpu_custom_call.1} parent=1 // loop_footer_branch
      %14 = sbr.rel target = $region3
    $region8: #{tpu_custom_call.1} parent=1 // loop_exit
      _
    %299 = vsyncpa [#allocation4], 1
    %s300 = scalar_lea.sflag [#allocation4], 1
    %301 = vsyncpa %s300, 1
    %302 = vsyncpa [#allocation7], 1
    %s303 = scalar_lea.sflag [#allocation7], 1
    %304 = vsyncpa %s303, 1
    %305 = vsyncpa [#allocation5], 1
    %s306 = scalar_lea.sflag [#allocation5], 1
    %307 = vsyncpa %s306, 1

</llo_original>
